<compile_context>
chip_gen: v7x
topology: tpu7x:2x2x1
jax: 0.10.0
libtpu: 0.0.40
codegen_flags: <defaults>
</compile_context>

<pallas_src>
import functools

import jax
import jax.numpy as jnp
import numpy as np
from jax import lax
from jax.experimental import pallas as pl
from jax.experimental.pallas import tpu as pltpu


def _round_up(x, m):
    return (x + m - 1) // m * m


# --------------------- fused lane-dense depthwise 3x3 conv (q/k/v) ---------------------

def _shift_lanes(x, off):
    """y[:, l] = x[:, l + off], zero-filled outside the block (no wraparound)."""
    if off == 0:
        return x
    ct, lp = x.shape
    z = jnp.zeros((ct, abs(off)), x.dtype)
    if off > 0:
        return jnp.concatenate([x[:, off:], z], axis=1)
    return jnp.concatenate([z, x[:, :lp + off]], axis=1)


def _dwconv_kernel(x_ref, w_ref, b_ref, o_ref, *, H, W, L):
    # x_ref: (1, 1, CT, Lp)  w_ref: (1, CT, 9)  b_ref: (1, CT, 1)  o_ref: (1, 1, CT, Lp)
    x = x_ref[0, 0].astype(jnp.float32)          # (CT, Lp), H*W on the lane axis
    wt = w_ref[0].astype(jnp.float32)            # (CT, 9)
    bias = b_ref[0].astype(jnp.float32)          # (CT, 1)
    ct, lp = x.shape

    lidx = lax.broadcasted_iota(jnp.int32, (ct, lp), 1)
    widx = lidx % W

    acc = jnp.zeros((ct, lp), jnp.float32)
    for di in (-1, 0, 1):
        for dj in (-1, 0, 1):
            ti = (di + 1) * 3 + (dj + 1)
            tap = wt[:, ti:ti + 1]               # (CT, 1)
            xs = _shift_lanes(x, di * W + dj)
            if dj == -1:                         # left column has no left neighbour
                xs = jnp.where(widx >= 1, xs, 0.0)
            elif dj == 1:                        # right column has no right neighbour
                xs = jnp.where(widx <= W - 2, xs, 0.0)
            acc = acc + tap * xs
    acc = acc + bias
    acc = jnp.where(lidx < L, acc, 0.0)          # zero the padded tail (keeps later sums exact)
    o_ref[0, 0] = acc.astype(o_ref.dtype)


def dwconv3x3_qkv(x, w, b, H, W, L):
    # x: (3, B, C, Lp) zero-padded past L;  w: (3, C, 9);  b: (3, C, 1)
    S, B, C, Lp = x.shape
    CT = min(C, 8) if C % min(C, 8) == 0 else C
    kernel = functools.partial(_dwconv_kernel, H=H, W=W, L=L)
    return pl.pallas_call(
        kernel,
        out_shape=jax.ShapeDtypeStruct((S, B, C, Lp), x.dtype),
        grid_spec=pltpu.PrefetchScalarGridSpec(
            num_scalar_prefetch=0,
            grid=(S, B, C // CT),
            in_specs=[
                pl.BlockSpec((1, 1, CT, Lp), lambda s, bi, ci: (s, bi, ci, 0)),
                pl.BlockSpec((1, CT, 9), lambda s, bi, ci: (s, ci, 0)),
                pl.BlockSpec((1, CT, 1), lambda s, bi, ci: (s, ci, 0)),
            ],
            out_specs=pl.BlockSpec((1, 1, CT, Lp), lambda s, bi, ci: (s, bi, ci, 0)),
        ),
        compiler_params=pltpu.CompilerParams(
            dimension_semantics=("parallel", "parallel", "parallel"),
            vmem_limit_bytes=64 * 1024 * 1024),
    )(x, w, b)


# ------------------ phase 1: L-tiled Gram + norms -> attention matrix ------------------

def _attn_matrix_kernel(q_ref, k_ref, p_ref, a_ref, g_acc, qss, kss):
    li = pl.program_id(1)

    @pl.when(li == 0)
    def _init():
        g_acc[...] = jnp.zeros_like(g_acc)
        qss[...] = jnp.zeros_like(qss)
        kss[...] = jnp.zeros_like(kss)

    qf = q_ref[0].astype(jnp.float32)            # (Hh, Cc, LT)
    kf = k_ref[0].astype(jnp.float32)
    # Gram accumulation on the MXU in bf16 (f32 accumulate).
    g_acc[...] += jnp.einsum(
        'hcl,hdl->hcd', qf.astype(jnp.bfloat16), kf.astype(jnp.bfloat16),
        preferred_element_type=jnp.float32)
    # L2 sums of squares kept in f32 (normalization is done once at finalize).
    qss[...] += jnp.sum(qf * qf, axis=-1)
    kss[...] += jnp.sum(kf * kf, axis=-1)

    @pl.when(li == pl.num_programs(1) - 1)
    def _finalize():
        Hh, Cc, _ = g_acc.shape
        dim = Hh * Cc
        eps2 = 1e-24                              # (torch F.normalize eps) ** 2
        inv_q = lax.rsqrt(jnp.maximum(qss[...], eps2))    # (Hh, Cc), EUP
        inv_k = lax.rsqrt(jnp.maximum(kss[...], eps2))
        attn3 = g_acc[...] * inv_q[:, :, None] * inv_k[:, None, :]   # (Hh, Cc, Cc)
        a2 = attn3.reshape(dim, Cc)               # rows indexed by (head, c)

        p = p_ref[...].astype(jnp.float32)        # (dim, 2*dim + 2) packed params
        w1 = p[:, :dim]                           # kron(th1_w * temp, I_Cc)
        w2 = p[:, dim:2 * dim]                    # kron(th2_w, I_Cc)
        b1 = p[:, 2 * dim:2 * dim + 1]
        b2 = p[:, 2 * dim + 1:2 * dim + 2]

        # talking-head 1 (temperature folded in) as an MXU dot
        a2 = jnp.dot(w1, a2, preferred_element_type=jnp.float32) + b1
        # numerically-stable softmax over the last axis, in f32
        m = jnp.max(a2, axis=-1, keepdims=True)
        e = jnp.exp(a2 - m)
        a2 = e * pl.reciprocal(jnp.sum(e, axis=-1, keepdims=True), approx=True)
        # talking-head 2
        a2 = jnp.dot(w2, a2, preferred_element_type=jnp.float32) + b2

        # expand to a block-diagonal (dim, dim) matrix so phase 2 is one dense 2-D dot
        a_big = jnp.concatenate([a2] * Hh, axis=1)            # (dim, dim)
        r = lax.broadcasted_iota(jnp.int32, (dim, dim), 0) // Cc
        c = lax.broadcasted_iota(jnp.int32, (dim, dim), 1) // Cc
        a_ref[0] = jnp.where(r == c, a_big, 0.0).astype(a_ref.dtype)


def attn_matrix(q, k, thp, lt):
    # q, k: (B, Hh, Cc, Lp);  thp: (dim, 2*dim + 2)
    B, Hh, Cc, Lp = q.shape
    dim = Hh * Cc
    nL = Lp // lt
    return pl.pallas_call(
        _attn_matrix_kernel,
        out_shape=jax.ShapeDtypeStruct((B, dim, dim), jnp.float32),
        grid_spec=pltpu.PrefetchScalarGridSpec(
            num_scalar_prefetch=0,
            grid=(B, nL),
            in_specs=[
                pl.BlockSpec((1, Hh, Cc, lt), lambda b, l: (b, 0, 0, l)),
                pl.BlockSpec((1, Hh, Cc, lt), lambda b, l: (b, 0, 0, l)),
                pl.BlockSpec((dim, 2 * dim + 2), lambda b, l: (0, 0)),
            ],
            out_specs=pl.BlockSpec((1, dim, dim), lambda b, l: (b, 0, 0)),
            scratch_shapes=[
                pltpu.VMEM((Hh, Cc, Cc), jnp.float32),   # Gram accumulator
                pltpu.VMEM((Hh, Cc), jnp.float32),       # sum(q^2) over L
                pltpu.VMEM((Hh, Cc), jnp.float32),       # sum(k^2) over L
            ]),
        compiler_params=pltpu.CompilerParams(
            dimension_semantics=("parallel", "arbitrary"),
            vmem_limit_bytes=32 * 1024 * 1024),
    )(q, k, thp)


# ---------------- phase 2: L-tiled (attn @ v) + 1x1 projection, lane-dense --------------

def _attn_apply_kernel(a_ref, v_ref, pwb_ref, o_ref):
    dim = a_ref.shape[1]
    a = a_ref[0].astype(jnp.bfloat16)            # (dim, dim) block-diagonal attention
    v = v_ref[0].astype(jnp.bfloat16)            # (dim, LT)
    out = jnp.dot(a, v, preferred_element_type=jnp.float32)          # (dim, LT) on MXU
    pwb = pwb_ref[...]
    pw = pwb[:, :dim].astype(jnp.bfloat16)
    pb = pwb[:, dim:dim + 1].astype(jnp.float32)
    y = jnp.dot(pw, out.astype(jnp.bfloat16),
                preferred_element_type=jnp.float32) + pb
    o_ref[0] = y.astype(o_ref.dtype)


def attn_apply(attn, v, pwb, lt):
    # attn: (B, dim, dim);  v: (B, dim, Lp);  pwb: (dim, dim + 1)
    B, dim, Lp = v.shape
    nL = Lp // lt
    # NOTE: if the v DMA is still exposed at large L, bump its pipeline depth with
    # pipeline_mode=pl.Buffered(3) on the v BlockSpec.
    return pl.pallas_call(
        _attn_apply_kernel,
        out_shape=jax.ShapeDtypeStruct((B, dim, Lp), v.dtype),
        grid_spec=pltpu.PrefetchScalarGridSpec(
            num_scalar_prefetch=0,
            grid=(B, nL),
            in_specs=[
                pl.BlockSpec((1, dim, dim), lambda b, l: (b, 0, 0)),
                pl.BlockSpec((1, dim, lt), lambda b, l: (b, 0, l)),
                pl.BlockSpec((dim, dim + 1), lambda b, l: (0, 0)),
            ],
            out_specs=pl.BlockSpec((1, dim, lt), lambda b, l: (b, 0, l)),
        ),
        compiler_params=pltpu.CompilerParams(
            dimension_semantics=("parallel", "parallel"),
            vmem_limit_bytes=32 * 1024 * 1024),
    )(attn, v, pwb)


# ------------------------------------ full forward --------------------------------------

def attention_forward(params, q_fea, k_fea, v_fea, num_heads, lt=512):
    B, C, H, W = q_fea.shape
    L = H * W
    # L tile: multiple of 128, re-derive per generation (v7x: keep the double-buffered
    # working set well under the 32 MiB scoped / 64 MiB physical VMEM).
    lt = max(128, _round_up(min(lt, _round_up(L, 128)), 128))
    Lp = _round_up(L, lt)

    # fused q/k/v depthwise conv, lane-dense (C, H*W) layout
    x = jnp.stack([q_fea, k_fea, v_fea], axis=0).reshape(3, B, C, L)
    if Lp != L:
        x = jnp.pad(x, ((0, 0), (0, 0), (0, 0), (0, Lp - L)))
    w = jnp.stack([params['qw'], params['kw'], params['vw']], axis=0).reshape(3, C, 9)
    b = jnp.stack([params['qb'], params['kb'], params['vb']], axis=0).reshape(3, C, 1)
    qkv = dwconv3x3_qkv(x, w, b, H, W, L)            # (3, B, C, Lp)
    q, k, v = qkv[0], qkv[1], qkv[2]

    Hh = num_heads
    Cc = C // Hh
    # pack talking-head params: temperature folded into th1 weights, kron-expanded so the
    # head mixing is a single (dim, dim) x (dim, Cc) MXU dot inside the kernel.
    eye = jnp.eye(Cc, dtype=jnp.float32)
    w1k = jnp.kron(params['th1_w'] * params['temp'][None, :], eye)
    w2k = jnp.kron(params['th2_w'], eye)
    b1k = jnp.repeat(params['th1_b'], Cc)[:, None]
    b2k = jnp.repeat(params['th2_b'], Cc)[:, None]
    thp = jnp.concatenate([w1k, w2k, b1k, b2k], axis=1)          # (C, 2C + 2)

    attn = attn_matrix(q.reshape(B, Hh, Cc, Lp),
                       k.reshape(B, Hh, Cc, Lp), thp, lt)        # (B, C, C)

    pwb = jnp.concatenate([params['proj_w'], params['proj_b'][:, None]], axis=1)
    out = attn_apply(attn, v, pwb, lt)                           # (B, C, Lp)
    return out[:, :, :L].reshape(B, C, H, W)


# --------------------------------- pure-JAX reference -----------------------------------

def reference_forward(params, q_fea, k_fea, v_fea, num_heads):
    B, C, H, W = q_fea.shape

    def dw(x, w, b):
        y = lax.conv_general_dilated(
            x, w.reshape(C, 1, 3, 3), (1, 1), ((1, 1), (1, 1)),
            dimension_numbers=('NCHW', 'OIHW', 'NCHW'),
            feature_group_count=C)
        return y + b[None, :, None, None]

    q = dw(q_fea, params['qw'], params['qb'])
    k = dw(k_fea, params['kw'], params['kb'])
    v = dw(v_fea, params['vw'], params['vb'])
    ch = C // num_heads
    q = q.reshape(B, num_heads, ch, H * W)
    k = k.reshape(B, num_heads, ch, H * W)
    v = v.reshape(B, num_heads, ch, H * W)

    def l2norm(x):
        return x / jnp.maximum(jnp.sqrt(jnp.sum(x * x, -1, keepdims=True)), 1e-12)

    q = l2norm(q)
    k = l2norm(k)
    attn = jnp.einsum('bhcl,bhdl->bhcd', q, k) * params['temp'][None, :, None, None]
    attn = jnp.einsum('oh,bhcd->bocd', params['th1_w'], attn) \
        + params['th1_b'][None, :, None, None]
    attn = jax.nn.softmax(attn, axis=-1)
    attn = jnp.einsum('oh,bhcd->bocd', params['th2_w'], attn) \
        + params['th2_b'][None, :, None, None]
    out = jnp.einsum('bhcd,bhdl->bhcl', attn, v).reshape(B, C, H * W)
    out = jnp.einsum('oc,bcl->bol', params['proj_w'], out) \
        + params['proj_b'][None, :, None]
    return out.reshape(B, C, H, W)


# ----------------------------------------- main ------------------------------------------

if __name__ == "__main__":
    dim, num_heads = 8, 2          # c_per_head = 4
    B, H, W = 2, 16, 16            # L = 256 -> two 128-lane L-chunks with lt=128

    key = jax.random.PRNGKey(0)
    ks = jax.random.split(key, 20)
    s = 0.1
    params = {
        'qw': jax.random.normal(ks[0], (dim, 3, 3), jnp.float32) * s,
        'qb': jax.random.normal(ks[1], (dim,), jnp.float32) * s,
        'kw': jax.random.normal(ks[2], (dim, 3, 3), jnp.float32) * s,
        'kb': jax.random.normal(ks[3], (dim,), jnp.float32) * s,
        'vw': jax.random.normal(ks[4], (dim, 3, 3), jnp.float32) * s,
        'vb': jax.random.normal(ks[5], (dim,), jnp.float32) * s,
        'temp': 1.0 + 0.5 * jax.random.normal(ks[6], (num_heads,), jnp.float32),
        'th1_w': jax.random.normal(ks[7], (num_heads, num_heads), jnp.float32) * 0.5,
        'th1_b': jax.random.normal(ks[8], (num_heads,), jnp.float32) * s,
        'th2_w': jax.random.normal(ks[9], (num_heads, num_heads), jnp.float32) * 0.5,
        'th2_b': jax.random.normal(ks[10], (num_heads,), jnp.float32) * s,
        'proj_w': jax.random.normal(ks[11], (dim, dim), jnp.float32) * s,
        'proj_b': jax.random.normal(ks[12], (dim,), jnp.float32) * s,
    }

    q_fea = jax.random.normal(ks[13], (B, dim, H, W), jnp.float32)
    k_fea = jax.random.normal(ks[14], (B, dim, H, W), jnp.float32)
    v_fea = jax.random.normal(ks[15], (B, dim, H, W), jnp.float32)

    out = attention_forward(params, q_fea, k_fea, v_fea, num_heads, lt=128)
    out = jax.block_until_ready(out)

    ref = jax.block_until_ready(
        reference_forward(params, q_fea, k_fea, v_fea, num_heads))

    # bf16 MXU operands (Gram, attn@v, projection) loosen agreement vs the f32 reference.
    np.testing.assert_allclose(np.asarray(out), np.asarray(ref),
                               rtol=2e-2, atol=2e-2)
    print("KERNEL_OK")
</pallas_src>

<mosaic_0001>
module attributes {stable_mosaic.version = 11 : i64} {
  func.func @_dwconv_kernel(%arg0: i32, %arg1: i32, %arg2: i32, %arg3: memref<1x1x8x256xf32, #tpu.memory_space<vmem>>, %arg4: memref<1x8x9xf32, #tpu.memory_space<vmem>>, %arg5: memref<1x8x1xf32, #tpu.memory_space<vmem>>, %arg6: memref<1x1x8x256xf32, #tpu.memory_space<vmem>>) attributes {dimension_semantics = [#tpu.dimension_semantics<parallel>, #tpu.dimension_semantics<parallel>, #tpu.dimension_semantics<parallel>], iteration_bounds = array<i64: 3, 2, 1>, scalar_prefetch = 0 : i64, scratch_operands = 0 : i64, tpu.core_type = #tpu.core_type<tc>, window_params = [{transform_indices = @transform_0, window_bounds = array<i64: 1, 1, 8, 256>}, {transform_indices = @transform_1, window_bounds = array<i64: 1, 8, 9>}, {transform_indices = @transform_2, window_bounds = array<i64: 1, 8, 1>}, {transform_indices = @transform_3, window_bounds = array<i64: 1, 1, 8, 256>}]} {
    %c0 = arith.constant 0 : index
    %c0_0 = arith.constant 0 : index
    %c0_1 = arith.constant 0 : index
    %c0_2 = arith.constant 0 : index
    %0 = vector.load %arg3[%c0, %c0_0, %c0_1, %c0_2] : memref<1x1x8x256xf32, #tpu.memory_space<vmem>>, vector<1x1x8x256xf32>
    %1 = vector.shape_cast %0 : vector<1x1x8x256xf32> to vector<8x256xf32>
    %c0_3 = arith.constant 0 : index
    %c0_4 = arith.constant 0 : index
    %c0_5 = arith.constant 0 : index
    %2 = vector.load %arg4[%c0_3, %c0_4, %c0_5] : memref<1x8x9xf32, #tpu.memory_space<vmem>>, vector<1x8x9xf32>
    %3 = vector.shape_cast %2 : vector<1x8x9xf32> to vector<8x9xf32>
    %c0_6 = arith.constant 0 : index
    %c0_7 = arith.constant 0 : index
    %c0_8 = arith.constant 0 : index
    %4 = vector.load %arg5[%c0_6, %c0_7, %c0_8] : memref<1x8x1xf32, #tpu.memory_space<vmem>>, vector<1x8x1xf32>
    %5 = vector.shape_cast %4 : vector<1x8x1xf32> to vector<8x1xf32>
    %6 = tpu.iota {dimensions = array<i32: 1>} : vector<8x256xi32>
    %c16_i32 = arith.constant 16 : i32
    %c0_i32 = arith.constant 0 : i32
    %7 = arith.cmpi eq, %c16_i32, %c0_i32 : i32
    %c1_i32 = arith.constant 1 : i32
    %8 = arith.select %7, %c1_i32, %c16_i32 : i32
    %9 = vector.broadcast %8 : i32 to vector<8x256xi32>
    %10 = arith.remsi %6, %9 : vector<8x256xi32>
    %c0_i32_9 = arith.constant 0 : i32
    %11 = vector.broadcast %c0_i32_9 : i32 to vector<8x256xi32>
    %12 = arith.cmpi ne, %10, %11 : vector<8x256xi32>
    %c0_i32_10 = arith.constant 0 : i32
    %13 = vector.broadcast %c0_i32_10 : i32 to vector<8x256xi32>
    %14 = arith.cmpi slt, %10, %13 : vector<8x256xi32>
    %c0_i32_11 = arith.constant 0 : i32
    %15 = arith.cmpi slt, %8, %c0_i32_11 : i32
    %16 = vector.broadcast %15 : i1 to vector<8x256xi1>
    %17 = vector.broadcast %16 : vector<8x256xi1> to vector<8x256xi1>
    %18 = arith.xori %14, %17 : vector<8x256xi1>
    %19 = arith.andi %18, %12 : vector<8x256xi1>
    %20 = vector.broadcast %8 : i32 to vector<8x256xi32>
    %21 = arith.addi %10, %20 : vector<8x256xi32>
    %22 = arith.select %19, %21, %10 : vector<8x256xi1>, vector<8x256xi32>
    %cst = arith.constant 0.000000e+00 : f32
    %23 = vector.broadcast %cst : f32 to vector<8x256xf32>
    %24 = vector.extract_strided_slice %3 {offsets = [0, 0], sizes = [8, 1], strides = [1, 1]} : vector<8x9xf32> to vector<8x1xf32>
    %cst_12 = arith.constant 0.000000e+00 : f32
    %25 = vector.broadcast %cst_12 : f32 to vector<8x17xf32>
    %26 = vector.extract_strided_slice %1 {offsets = [0, 0], sizes = [8, 239], strides = [1, 1]} : vector<8x256xf32> to vector<8x239xf32>
    %27 = tpu.concatenate %25, %26 in 1 : vector<8x17xf32>, vector<8x239xf32> -> vector<8x256xf32>
    %c1_i32_13 = arith.constant 1 : i32
    %28 = vector.broadcast %c1_i32_13 : i32 to vector<8x256xi32>
    %29 = arith.cmpi sge, %22, %28 : vector<8x256xi32>
    %cst_14 = arith.constant 0.000000e+00 : f32
    %30 = vector.broadcast %cst_14 : f32 to vector<8x256xf32>
    %31 = arith.select %29, %27, %30 : vector<8x256xi1>, vector<8x256xf32>
    %32 = vector.broadcast %24 : vector<8x1xf32> to vector<8x256xf32>
    %33 = arith.mulf %32, %31 : vector<8x256xf32>
    %34 = arith.addf %23, %33 : vector<8x256xf32>
    %35 = vector.extract_strided_slice %3 {offsets = [0, 1], sizes = [8, 1], strides = [1, 1]} : vector<8x9xf32> to vector<8x1xf32>
    %cst_15 = arith.constant 0.000000e+00 : f32
    %36 = vector.broadcast %cst_15 : f32 to vector<8x16xf32>
    %37 = vector.extract_strided_slice %1 {offsets = [0, 0], sizes = [8, 240], strides = [1, 1]} : vector<8x256xf32> to vector<8x240xf32>
    %38 = tpu.concatenate %36, %37 in 1 : vector<8x16xf32>, vector<8x240xf32> -> vector<8x256xf32>
    %39 = vector.broadcast %35 : vector<8x1xf32> to vector<8x256xf32>
    %40 = arith.mulf %39, %38 : vector<8x256xf32>
    %41 = arith.addf %34, %40 : vector<8x256xf32>
    %42 = vector.extract_strided_slice %3 {offsets = [0, 2], sizes = [8, 1], strides = [1, 1]} : vector<8x9xf32> to vector<8x1xf32>
    %cst_16 = arith.constant 0.000000e+00 : f32
    %43 = vector.broadcast %cst_16 : f32 to vector<8x15xf32>
    %44 = vector.extract_strided_slice %1 {offsets = [0, 0], sizes = [8, 241], strides = [1, 1]} : vector<8x256xf32> to vector<8x241xf32>
    %45 = tpu.concatenate %43, %44 in 1 : vector<8x15xf32>, vector<8x241xf32> -> vector<8x256xf32>
    %c14_i32 = arith.constant 14 : i32
    %46 = vector.broadcast %c14_i32 : i32 to vector<8x256xi32>
    %47 = arith.cmpi sle, %22, %46 : vector<8x256xi32>
    %cst_17 = arith.constant 0.000000e+00 : f32
    %48 = vector.broadcast %cst_17 : f32 to vector<8x256xf32>
    %49 = arith.select %47, %45, %48 : vector<8x256xi1>, vector<8x256xf32>
    %50 = vector.broadcast %42 : vector<8x1xf32> to vector<8x256xf32>
    %51 = arith.mulf %50, %49 : vector<8x256xf32>
    %52 = arith.addf %41, %51 : vector<8x256xf32>
    %53 = vector.extract_strided_slice %3 {offsets = [0, 3], sizes = [8, 1], strides = [1, 1]} : vector<8x9xf32> to vector<8x1xf32>
    %cst_18 = arith.constant 0.000000e+00 : f32
    %54 = vector.broadcast %cst_18 : f32 to vector<8x1xf32>
    %55 = vector.extract_strided_slice %1 {offsets = [0, 0], sizes = [8, 255], strides = [1, 1]} : vector<8x256xf32> to vector<8x255xf32>
    %56 = tpu.concatenate %54, %55 in 1 : vector<8x1xf32>, vector<8x255xf32> -> vector<8x256xf32>
    %c1_i32_19 = arith.constant 1 : i32
    %57 = vector.broadcast %c1_i32_19 : i32 to vector<8x256xi32>
    %58 = arith.cmpi sge, %22, %57 : vector<8x256xi32>
    %cst_20 = arith.constant 0.000000e+00 : f32
    %59 = vector.broadcast %cst_20 : f32 to vector<8x256xf32>
    %60 = arith.select %58, %56, %59 : vector<8x256xi1>, vector<8x256xf32>
    %61 = vector.broadcast %53 : vector<8x1xf32> to vector<8x256xf32>
    %62 = arith.mulf %61, %60 : vector<8x256xf32>
    %63 = arith.addf %52, %62 : vector<8x256xf32>
    %64 = vector.extract_strided_slice %3 {offsets = [0, 4], sizes = [8, 1], strides = [1, 1]} : vector<8x9xf32> to vector<8x1xf32>
    %65 = vector.broadcast %64 : vector<8x1xf32> to vector<8x256xf32>
    %66 = arith.mulf %65, %1 : vector<8x256xf32>
    %67 = arith.addf %63, %66 : vector<8x256xf32>
    %68 = vector.extract_strided_slice %3 {offsets = [0, 5], sizes = [8, 1], strides = [1, 1]} : vector<8x9xf32> to vector<8x1xf32>
    %cst_21 = arith.constant 0.000000e+00 : f32
    %69 = vector.broadcast %cst_21 : f32 to vector<8x1xf32>
    %70 = vector.extract_strided_slice %1 {offsets = [0, 1], sizes = [8, 255], strides = [1, 1]} : vector<8x256xf32> to vector<8x255xf32>
    %71 = tpu.concatenate %70, %69 in 1 : vector<8x255xf32>, vector<8x1xf32> -> vector<8x256xf32>
    %c14_i32_22 = arith.constant 14 : i32
    %72 = vector.broadcast %c14_i32_22 : i32 to vector<8x256xi32>
    %73 = arith.cmpi sle, %22, %72 : vector<8x256xi32>
    %cst_23 = arith.constant 0.000000e+00 : f32
    %74 = vector.broadcast %cst_23 : f32 to vector<8x256xf32>
    %75 = arith.select %73, %71, %74 : vector<8x256xi1>, vector<8x256xf32>
    %76 = vector.broadcast %68 : vector<8x1xf32> to vector<8x256xf32>
    %77 = arith.mulf %76, %75 : vector<8x256xf32>
    %78 = arith.addf %67, %77 : vector<8x256xf32>
    %79 = vector.extract_strided_slice %3 {offsets = [0, 6], sizes = [8, 1], strides = [1, 1]} : vector<8x9xf32> to vector<8x1xf32>
    %cst_24 = arith.constant 0.000000e+00 : f32
    %80 = vector.broadcast %cst_24 : f32 to vector<8x15xf32>
    %81 = vector.extract_strided_slice %1 {offsets = [0, 15], sizes = [8, 241], strides = [1, 1]} : vector<8x256xf32> to vector<8x241xf32>
    %82 = tpu.concatenate %81, %80 in 1 : vector<8x241xf32>, vector<8x15xf32> -> vector<8x256xf32>
    %c1_i32_25 = arith.constant 1 : i32
    %83 = vector.broadcast %c1_i32_25 : i32 to vector<8x256xi32>
    %84 = arith.cmpi sge, %22, %83 : vector<8x256xi32>
    %cst_26 = arith.constant 0.000000e+00 : f32
    %85 = vector.broadcast %cst_26 : f32 to vector<8x256xf32>
    %86 = arith.select %84, %82, %85 : vector<8x256xi1>, vector<8x256xf32>
    %87 = vector.broadcast %79 : vector<8x1xf32> to vector<8x256xf32>
    %88 = arith.mulf %87, %86 : vector<8x256xf32>
    %89 = arith.addf %78, %88 : vector<8x256xf32>
    %90 = vector.extract_strided_slice %3 {offsets = [0, 7], sizes = [8, 1], strides = [1, 1]} : vector<8x9xf32> to vector<8x1xf32>
    %cst_27 = arith.constant 0.000000e+00 : f32
    %91 = vector.broadcast %cst_27 : f32 to vector<8x16xf32>
    %92 = vector.extract_strided_slice %1 {offsets = [0, 16], sizes = [8, 240], strides = [1, 1]} : vector<8x256xf32> to vector<8x240xf32>
    %93 = tpu.concatenate %92, %91 in 1 : vector<8x240xf32>, vector<8x16xf32> -> vector<8x256xf32>
    %94 = vector.broadcast %90 : vector<8x1xf32> to vector<8x256xf32>
    %95 = arith.mulf %94, %93 : vector<8x256xf32>
    %96 = arith.addf %89, %95 : vector<8x256xf32>
    %97 = vector.extract_strided_slice %3 {offsets = [0, 8], sizes = [8, 1], strides = [1, 1]} : vector<8x9xf32> to vector<8x1xf32>
    %cst_28 = arith.constant 0.000000e+00 : f32
    %98 = vector.broadcast %cst_28 : f32 to vector<8x17xf32>
    %99 = vector.extract_strided_slice %1 {offsets = [0, 17], sizes = [8, 239], strides = [1, 1]} : vector<8x256xf32> to vector<8x239xf32>
    %100 = tpu.concatenate %99, %98 in 1 : vector<8x239xf32>, vector<8x17xf32> -> vector<8x256xf32>
    %c14_i32_29 = arith.constant 14 : i32
    %101 = vector.broadcast %c14_i32_29 : i32 to vector<8x256xi32>
    %102 = arith.cmpi sle, %22, %101 : vector<8x256xi32>
    %cst_30 = arith.constant 0.000000e+00 : f32
    %103 = vector.broadcast %cst_30 : f32 to vector<8x256xf32>
    %104 = arith.select %102, %100, %103 : vector<8x256xi1>, vector<8x256xf32>
    %105 = vector.broadcast %97 : vector<8x1xf32> to vector<8x256xf32>
    %106 = arith.mulf %105, %104 : vector<8x256xf32>
    %107 = arith.addf %96, %106 : vector<8x256xf32>
    %108 = vector.broadcast %5 : vector<8x1xf32> to vector<8x256xf32>
    %109 = arith.addf %107, %108 : vector<8x256xf32>
    %c256_i32 = arith.constant 256 : i32
    %110 = vector.broadcast %c256_i32 : i32 to vector<8x256xi32>
    %111 = arith.cmpi slt, %6, %110 : vector<8x256xi32>
    %cst_31 = arith.constant 0.000000e+00 : f32
    %112 = vector.broadcast %cst_31 : f32 to vector<8x256xf32>
    %113 = arith.select %111, %109, %112 : vector<8x256xi1>, vector<8x256xf32>
    %c0_32 = arith.constant 0 : index
    %c0_33 = arith.constant 0 : index
    %c0_34 = arith.constant 0 : index
    %c0_35 = arith.constant 0 : index
    %114 = vector.load %arg6[%c0_32, %c0_33, %c0_34, %c0_35] : memref<1x1x8x256xf32, #tpu.memory_space<vmem>>, vector<1x1x8x256xf32>
    %115 = vector.shape_cast %114 : vector<1x1x8x256xf32> to vector<8x256xf32>
    %116 = vector.shape_cast %113 : vector<8x256xf32> to vector<1x1x8x256xf32>
    tpu.vector_store %arg6[%c0_32, %c0_33, %c0_34, %c0_35], %116 {strides = array<i32>} : memref<1x1x8x256xf32, #tpu.memory_space<vmem>>, vector<1x1x8x256xf32>,
    return
  }
  func.func @transform_0(%arg0: i32, %arg1: i32, %arg2: i32) -> (i32, i32, i32, i32) {
    %c0_i32 = arith.constant 0 : i32
    %c0_i32_0 = arith.constant 0 : i32
    return %arg0, %arg1, %arg2, %c0_i32 : i32, i32, i32, i32
  }
  func.func @transform_1(%arg0: i32, %arg1: i32, %arg2: i32) -> (i32, i32, i32) {
    %c0_i32 = arith.constant 0 : i32
    %c0_i32_0 = arith.constant 0 : i32
    return %arg0, %arg2, %c0_i32 : i32, i32, i32
  }
  func.func @transform_2(%arg0: i32, %arg1: i32, %arg2: i32) -> (i32, i32, i32) {
    %c0_i32 = arith.constant 0 : i32
    %c0_i32_0 = arith.constant 0 : i32
    return %arg0, %arg2, %c0_i32 : i32, i32, i32
  }
  func.func @transform_3(%arg0: i32, %arg1: i32, %arg2: i32) -> (i32, i32, i32, i32) {
    %c0_i32 = arith.constant 0 : i32
    %c0_i32_0 = arith.constant 0 : i32
    return %arg0, %arg1, %arg2, %c0_i32 : i32, i32, i32, i32
  }
}

</mosaic_0001>

<llo_original>
// kernel: tpu_custom_call.1
$region0: #{tpu_custom_call.1}
  #allocation0 [shape = 'u32[]', space=smem, size = 0x4, offset = 0x4, fixed_abs, tag = 'smem constant byte address 0x4 - core index']
  #allocation1 [shape = 'u32[144,128]{1,0:T(1,128)}', space=vmem, size = 0x12000, scoped, tag = 'internal scratch']
  %s0 = inlined_call_operand.hbm [shape: f32[3,2,8,256], index: 0, kind: input, shape index: {}]
  %s1 = inlined_call_operand.hbm [shape: f32[3,8,9], index: 1, kind: input, shape index: {}]
  %s2 = inlined_call_operand.hbm [shape: f32[3,8,1], index: 2, kind: input, shape index: {}]
  %s3 = inlined_call_operand.hbm [shape: f32[3,2,8,256], index: 3, kind: output, shape index: {}]
  %s4 = sld [smem:[#allocation0]]
  $region57: #{tpu_custom_call.1} parent=0
    _
  %s6 = ssub.s32 1, %s4
  %s7 = scalar_select 0, %s6, %s4
  $region1: #{tpu_custom_call.1} parent=0
    #allocation2 [shape = 'u8[16384]{0}', space=vmem, size = 0x4000, scoped, tag = 'input window, operand 0']
    #allocation3 [shape = 's32[2]{0}', space=sflag, size = 0x8, scoped, tag = 'scoped memory for tpu_custom_call.1']
    #allocation4 [shape = 's32[2]{0}', space=sflag, size = 0x8, scoped, tag = 'scoped memory for tpu_custom_call.1']
    #allocation5 [shape = 'u8[8192]{0}', space=vmem, size = 0x2000, scoped, tag = 'input window, operand 1']
    #allocation6 [shape = 's32[2]{0}', space=sflag, size = 0x8, scoped, tag = 'scoped memory for tpu_custom_call.1']
    #allocation7 [shape = 'u8[8192]{0}', space=vmem, size = 0x2000, scoped, tag = 'input window, operand 2']
    #allocation8 [shape = 'u8[16384]{0}', space=vmem, size = 0x4000, scoped, tag = 'output window, operand 0']
    %8 = vsyncpa [#allocation3], 0
    %s9 = scalar_lea.sflag [#allocation3], 1
    %10 = vsyncpa %s9, 0
    %11 = vsyncpa [#allocation6], 0
    %s12 = scalar_lea.sflag [#allocation6], 1
    %13 = vsyncpa %s12, 0
    %14 = vsyncpa [#allocation4], 0
    %s15 = scalar_lea.sflag [#allocation4], 1
    %16 = vsyncpa %s15, 0
    loop: start=0, step=1, limit=8
    $region2: #{tpu_custom_call.1} parent=1 // loop_pre_header
      _
    $region3: #{tpu_custom_call.1} parent=1 // loop_header
      %s18 = sphi 0, %s22
      %p19 = scmp.ge.s32.totalorder %s18, 8
      %s25 = sphi 0, %s44
      %s26 = sphi 0, %s40
      %s27 = sphi 0, %s36
      %s28 = sphi 0, %s25
      %s29 = sphi 0, %s26
      %s30 = sphi 0, %s27
      %s31 = sphi 0, %s28
      %s32 = sphi 0, %s29
      %s33 = sphi 0, %s30
      %s51 = sphi 0, %s53
      %s54 = sphi 0, %s51
      %s55 = sphi 0, %s54
      %s71 = sphi 0, %s55
      %s79 = sphi 0, %s81
      %s82 = sphi 0, %s79
      %s83 = sphi 0, %s82
      %s99 = sphi 0, %s83
      %s107 = sphi 0, %s109
      %s110 = sphi 0, %s107
      %s111 = sphi 0, %s110
      %s127 = sphi 0, %s111
      %s137 = sphi 0, %s139
      %s140 = sphi 0, %s137
      %s141 = sphi 0, %s140
      %s157 = sphi 0, %s141
    $region4: #{tpu_custom_call.1} parent=1 // loop_header_branch
      %21 = sbr.rel (%p19) target = $region8
    $region5: #{tpu_custom_call.1} parent=1 // loop_body
      %s23 = ssub.s32 %s18, 1
      %s24 = ssub.s32 %s18, 2
      %s34 = sadd.s32 1, %s27
      %p35 = scmp.ge.s32.totalorder %s34, 1
      %s36 = scalar_select %p35, 0, %s34
      %s37 = sadd.s32 1, %s26
      %s38 = scalar_select %p35, %s37, %s26
      %p39 = scmp.ge.s32.totalorder %s38, 2
      %s40 = scalar_select %p39, 0, %s38
      %s41 = sadd.s32 1, %s25
      %s42 = scalar_select %p39, %s41, %s25
      %p43 = scmp.ge.s32.totalorder %s42, 3
      %s44 = scalar_select %p43, 0, %s42
      %s45 = ssub.s32 %s25, %s44
      %s46 = ssub.s32 %s26, %s40
      %s47 = sor.u32 %s45, %s46
      %s48 = ssub.s32 %s27, %s36
      %s49 = sor.u32 %s47, %s48
      %p50 = scmp.eq.s32.totalorder %s49, 0
      %s52 = sadd.s32 %s51, 1
      %s53 = scalar_select %p50, %s51, %s52
      %p56 = pneg %p50
      %p57 = scmp.eq.s32.totalorder %s18, 5
      %p58 = por %p56, %p57
      %p59 = scmp.ne.s32.totalorder %s51, %s54
      %p60 = scmp.eq.s32.totalorder %s18, 0
      %p61 = por %p59, %p60
      %p62 = scmp.ne.s32.totalorder %s51, %s54
      %p63 = scmp.eq.s32.totalorder %s23, 5
      %p64 = por %p62, %p63
      %p65 = scmp.ne.s32.totalorder %s54, %s55
      %p66 = scmp.eq.s32.totalorder %s23, 0
      %p67 = por %p65, %p66
      %p68 = scmp.ne.s32.totalorder %s54, %s55
      %p69 = scmp.eq.s32.totalorder %s24, 5
      %p70 = por %p68, %p69
      %p72 = scmp.ne.s32.totalorder %s55, %s71
      %p73 = scmp.eq.s32.totalorder %s24, 0
      %p74 = por %p72, %p73
      %s75 = ssub.s32 %s25, %s44
      %s76 = ssub.s32 %s27, %s36
      %s77 = sor.u32 %s75, %s76
      %p78 = scmp.eq.s32.totalorder %s77, 0
      %s80 = sadd.s32 %s79, 1
      %s81 = scalar_select %p78, %s79, %s80
      %p84 = pneg %p78
      %p85 = scmp.eq.s32.totalorder %s18, 5
      %p86 = por %p84, %p85
      %p87 = scmp.ne.s32.totalorder %s79, %s82
      %p88 = scmp.eq.s32.totalorder %s18, 0
      %p89 = por %p87, %p88
      %p90 = scmp.ne.s32.totalorder %s79, %s82
      %p91 = scmp.eq.s32.totalorder %s23, 5
      %p92 = por %p90, %p91
      %p93 = scmp.ne.s32.totalorder %s82, %s83
      %p94 = scmp.eq.s32.totalorder %s23, 0
      %p95 = por %p93, %p94
      %p96 = scmp.ne.s32.totalorder %s82, %s83
      %p97 = scmp.eq.s32.totalorder %s24, 5
      %p98 = por %p96, %p97
      %p100 = scmp.ne.s32.totalorder %s83, %s99
      %p101 = scmp.eq.s32.totalorder %s24, 0
      %p102 = por %p100, %p101
      %s103 = ssub.s32 %s25, %s44
      %s104 = ssub.s32 %s27, %s36
      %s105 = sor.u32 %s103, %s104
      %p106 = scmp.eq.s32.totalorder %s105, 0
      %s108 = sadd.s32 %s107, 1
      %s109 = scalar_select %p106, %s107, %s108
      %p112 = pneg %p106
      %p113 = scmp.eq.s32.totalorder %s18, 5
      %p114 = por %p112, %p113
      %p115 = scmp.ne.s32.totalorder %s107, %s110
      %p116 = scmp.eq.s32.totalorder %s18, 0
      %p117 = por %p115, %p116
      %p118 = scmp.ne.s32.totalorder %s107, %s110
      %p119 = scmp.eq.s32.totalorder %s23, 5
      %p120 = por %p118, %p119
      %p121 = scmp.ne.s32.totalorder %s110, %s111
      %p122 = scmp.eq.s32.totalorder %s23, 0
      %p123 = por %p121, %p122
      %p124 = scmp.ne.s32.totalorder %s110, %s111
      %p125 = scmp.eq.s32.totalorder %s24, 5
      %p126 = por %p124, %p125
      %p128 = scmp.ne.s32.totalorder %s111, %s127
      %p129 = scmp.eq.s32.totalorder %s24, 0
      %p130 = por %p128, %p129
      %s131 = ssub.s32 %s25, %s44
      %s132 = ssub.s32 %s26, %s40
      %s133 = sor.u32 %s131, %s132
      %s134 = ssub.s32 %s27, %s36
      %s135 = sor.u32 %s133, %s134
      %p136 = scmp.eq.s32.totalorder %s135, 0
      %s138 = sadd.s32 %s137, 1
      %s139 = scalar_select %p136, %s137, %s138
      %p142 = pneg %p136
      %p143 = scmp.eq.s32.totalorder %s18, 5
      %p144 = por %p142, %p143
      %p145 = scmp.ne.s32.totalorder %s137, %s140
      %p146 = scmp.eq.s32.totalorder %s18, 0
      %p147 = por %p145, %p146
      %p148 = scmp.ne.s32.totalorder %s137, %s140
      %p149 = scmp.eq.s32.totalorder %s23, 5
      %p150 = por %p148, %p149
      %p151 = scmp.ne.s32.totalorder %s140, %s141
      %p152 = scmp.eq.s32.totalorder %s23, 0
      %p153 = por %p151, %p152
      %p154 = scmp.ne.s32.totalorder %s140, %s141
      %p155 = scmp.eq.s32.totalorder %s24, 5
      %p156 = por %p154, %p155
      %p158 = scmp.ne.s32.totalorder %s141, %s157
      %p159 = scmp.eq.s32.totalorder %s24, 0
      %p160 = por %p158, %p159
      %p161 = scmp.le.s32.totalorder 1, %s18
      %p162 = scmp.lt.s32.totalorder %s18, 7
      %p163 = pnand %p161, %p162
      %p164 = pneg %p163
      // Predicated region
      $region9: #{tpu_custom_call.1} parent=5 // pred_check
        _
      $region10: #{tpu_custom_call.1} parent=5 // pred_check_branch
        %166 = sbr.rel (%p163) target = $region12
      $region11: #{tpu_custom_call.1} parent=5 // pred_region
        %s167 = ssub.s32 %s18, 1
      $region12: #{tpu_custom_call.1} parent=5 // pred_fallthru
        _
      %p168 = scmp.lt.s32.totalorder %s18, 6
      // Predicated region
      $region13: #{tpu_custom_call.1} parent=5 // pred_check
        %p169 = pneg %p168
      $region14: #{tpu_custom_call.1} parent=5 // pred_check_branch
        %171 = sbr.rel (%p169) target = $region16
      $region15: #{tpu_custom_call.1} parent=5 // pred_region
        // Predicated region
        $region17: #{tpu_custom_call.1} parent=15 // pred_check
          %p172 = pneg %p61
        $region18: #{tpu_custom_call.1} parent=15 // pred_check_branch
          %174 = sbr.rel (%p172) target = $region20
        $region19: #{tpu_custom_call.1} parent=15 // pred_region
          %s175 = sand.u32 %s51, 1
          %s176 = scalar_lea.sflag [#allocation3], %s175
          %s177 = sand.u32 %s51, 1
          %s178 = smul.addr %s177, 16
          %s179 = scalar_lea.vmem [#allocation2], %s178
          %s181 = ssub.s32 256, 256
          %182 = vsyncadd %s176, %s181
          %s183 = smul.addr %s27, 2
          %s184 = smul.addr %s26, 2
          %s185 = sadd.s32 %s183, %s184
          %s186 = smul.addr %s25, 4
          %s187 = sadd.s32 %s185, %s186
          %s188 = smul.addr %s187, 128
          %s189 = scalar_lea.hbm %s0, %s188
          %s191 = sshll.u32 %s179, 4
          %s192 = int_to_ptr.vmem [resolvable:$true] %s191
          %194 = dma.hbm_to_vmem [thread:$0]  %s189, 256, %s192, %s176
        $region20: #{tpu_custom_call.1} parent=15 // pred_fallthru
          _
        // Predicated region
        $region21: #{tpu_custom_call.1} parent=15 // pred_check
          %p195 = pneg %p89
        $region22: #{tpu_custom_call.1} parent=15 // pred_check_branch
          %197 = sbr.rel (%p195) target = $region24
        $region23: #{tpu_custom_call.1} parent=15 // pred_region
          %s198 = sand.u32 %s18, 1
          %s199 = scalar_lea.sflag [#allocation6], %s198
          %s200 = sand.u32 %s79, 1
          %s201 = smul.addr %s200, 8
          %s202 = scalar_lea.vmem [#allocation5], %s201
          %s204 = ssub.s32 128, 128
          %205 = vsyncadd %s199, %s204
          %s206 = sadd.s32 %s27, %s25
          %s207 = smul.addr %s206, 128
          %s208 = scalar_lea.hbm %s1, %s207
          %s210 = sshll.u32 %s202, 4
          %s211 = int_to_ptr.vmem [resolvable:$true] %s210
          %213 = dma.hbm_to_vmem [thread:$0]  %s208, 128, %s211, %s199
        $region24: #{tpu_custom_call.1} parent=15 // pred_fallthru
          _
        // Predicated region
        $region25: #{tpu_custom_call.1} parent=15 // pred_check
          %p214 = pneg %p117
        $region26: #{tpu_custom_call.1} parent=15 // pred_check_branch
          %216 = sbr.rel (%p214) target = $region28
        $region27: #{tpu_custom_call.1} parent=15 // pred_region
          %s217 = sand.u32 %s18, 1
          %s218 = scalar_lea.sflag [#allocation6], %s217
          %s219 = sand.u32 %s107, 1
          %s220 = smul.addr %s219, 8
          %s221 = scalar_lea.vmem [#allocation7], %s220
          %s223 = ssub.s32 128, 128
          %224 = vsyncadd %s218, %s223
          %s225 = sadd.s32 %s27, %s25
          %s226 = smul.addr %s225, 128
          %s227 = scalar_lea.hbm %s2, %s226
          %s229 = sshll.u32 %s221, 4
          %s230 = int_to_ptr.vmem [resolvable:$true] %s229
          %232 = dma.hbm_to_vmem [thread:$0]  %s227, 128, %s230, %s218
        $region28: #{tpu_custom_call.1} parent=15 // pred_fallthru
          _
      $region16: #{tpu_custom_call.1} parent=5 // pred_fallthru
        _
      %p233 = scmp.le.s32.totalorder 1, %s18
      %p234 = scmp.lt.s32.totalorder %s18, 7
      %p235 = pnand %p233, %p234
      %p236 = pneg %p235
      // Predicated region
      $region29: #{tpu_custom_call.1} parent=5 // pred_check
        _
      $region30: #{tpu_custom_call.1} parent=5 // pred_check_branch
        %238 = sbr.rel (%p235) target = $region32
      $region31: #{tpu_custom_call.1} parent=5 // pred_region
        %s239 = ssub.s32 %s18, 1
        %s240 = sand.u32 %s54, 1
        %s241 = scalar_lea.sflag [#allocation3], %s240
        %s242 = sand.u32 %s54, 1
        %s243 = smul.addr %s242, 16
        %s244 = scalar_lea.vmem [#allocation2], %s243
        // Predicated region
        $region33: #{tpu_custom_call.1} parent=31 // pred_check
          %p245 = pneg %p67
        $region34: #{tpu_custom_call.1} parent=31 // pred_check_branch
          %247 = sbr.rel (%p245) target = $region36
        $region35: #{tpu_custom_call.1} parent=31 // pred_region
          %248 = dma.done %s241, 256
        $region36: #{tpu_custom_call.1} parent=31 // pred_fallthru
          _
        %s249 = sand.u32 %s23, 1
        %s250 = scalar_lea.sflag [#allocation6], %s249
        %s251 = sand.u32 %s82, 1
        %s252 = smul.addr %s251, 8
        %s253 = scalar_lea.vmem [#allocation5], %s252
        // Predicated region
        $region37: #{tpu_custom_call.1} parent=31 // pred_check
          %p254 = pneg %p95
        $region38: #{tpu_custom_call.1} parent=31 // pred_check_branch
          %256 = sbr.rel (%p254) target = $region40
        $region39: #{tpu_custom_call.1} parent=31 // pred_region
          %257 = dma.done %s250, 128
        $region40: #{tpu_custom_call.1} parent=31 // pred_fallthru
          _
        %s258 = sand.u32 %s23, 1
        %s259 = scalar_lea.sflag [#allocation6], %s258
        %s260 = sand.u32 %s110, 1
        %s261 = smul.addr %s260, 8
        %s262 = scalar_lea.vmem [#allocation7], %s261
        // Predicated region
        $region41: #{tpu_custom_call.1} parent=31 // pred_check
          %p263 = pneg %p123
        $region42: #{tpu_custom_call.1} parent=31 // pred_check_branch
          %265 = sbr.rel (%p263) target = $region44
        $region43: #{tpu_custom_call.1} parent=31 // pred_region
          %266 = dma.done %s259, 128
        $region44: #{tpu_custom_call.1} parent=31 // pred_fallthru
          _
        %s267 = sand.u32 %s54, 1
        %s268 = scalar_lea.sflag [#allocation3], %s267
        %s269 = sand.u32 %s54, 1
        %s270 = smul.addr %s269, 16
        %s271 = scalar_lea.vmem [#allocation2], %s270
        %p272 = pneg %p67
        %p273 = pneg %p64
        %s274 = sand.u32 %s23, 1
        %s275 = scalar_lea.sflag [#allocation6], %s274
        %s276 = sand.u32 %s82, 1
        %s277 = smul.addr %s276, 8
        %s278 = scalar_lea.vmem [#allocation5], %s277
        %p279 = pneg %p95
        %p280 = pneg %p92
        %s281 = sand.u32 %s23, 1
        %s282 = scalar_lea.sflag [#allocation6], %s281
        %s283 = sand.u32 %s110, 1
        %s284 = smul.addr %s283, 8
        %s285 = scalar_lea.vmem [#allocation7], %s284
        %p286 = pneg %p123
        %p287 = pneg %p120
        %p288 = pneg %p153
        %p289 = pneg %p150
        %s290 = sand.u32 %s140, 1
        %s291 = scalar_lea.sflag [#allocation4], %s290
        %s292 = sand.u32 %s140, 1
        %s293 = smul.addr %s292, 16
        %s294 = scalar_lea.vmem [#allocation8], %s293
        %v295 = vld [vmem:[%s244] sm:$0xff]
        %v296 = vld [vmem:[%s244 + $0x8] sm:$0xff]
        %v297 = vld [vmem:[%s253] sm:$0xff]
        %v298 = vld [vmem:[%s262] sm:$0xff]
        %v299 = vlaneseq
        %v300 = vand.u32 %v299, 127
        %v301 = vadd.s32 %v300, 128
        %vm302 = vcmp.lt.s32.totalorder %v300, 0
        %v303 = vsub.s32 0, %v300
        %v304 = vsel %vm302, %v303, %v300
        %v305 = vshrl.u32 %v304, 4
        %v306 = vand.u32 %v304, 15
        %v307 = vsub.s32 0, %v306
        %v308 = vsel %vm302, %v307, %v306
        %vm309 = vcmp.lt.s32.totalorder %v301, 0
        %v310 = vsub.s32 0, %v301
        %v311 = vsel %vm309, %v310, %v301
        %v312 = vshrl.u32 %v311, 4
        %v313 = vand.u32 %v311, 15
        %v314 = vsub.s32 0, %v313
        %v315 = vsel %vm309, %v314, %v313
        %vm316 = vcmp.ne.s32.totalorder %v308, 0
        %vm317 = vcmp.ne.s32.totalorder %v315, 0
        %vm318 = vcmp.lt.s32.totalorder %v308, 0
        %vm319 = vcmp.lt.s32.totalorder %v315, 0
        %vm320 = vmand %vm318, %vm316
        %vm321 = vmand %vm319, %vm317
        %v322 = vadd.s32 %v308, 16
        %v323 = vadd.s32 %v315, 16
        %v324 = vsel %vm320, %v322, %v308
        %v325 = vsel %vm321, %v323, %v315
        %328 = vrot.lane.b32.xlu0 %v295, 17
        %v329 = vpop.permute.xlu0 %328
        %330 = vrot.lane.b32.xlu0 %v296, 17
        %v331 = vpop.permute.xlu0 %330
        %vm332 = vcmask 138240
        %v333 = vsel %vm332, %v329, %v331
        %v336 = vsel %vm332, 0.0, %v329
        %vm337 = vcmp.ge.s32.totalorder %v324, 1
        %vm338 = vcmp.ge.s32.totalorder %v325, 1
        %v339 = vsel %vm337, %v336, 0.0
        %v340 = vsel %vm338, %v333, 0.0
        %342 = vset.pattern.permute.xlu0 0
        %343 = vperm.xlu0 %342, %v297
        %v344 = vpop.permute.xlu0 %343
        %v346 = vmul.f32 %v344, %v339
        %v347 = vmul.f32 %v344, %v340
        %v348 = vadd.f32 %v346, 0.0
        %v349 = vadd.f32 %v347, 0.0
        %350 = vrot.lane.b32.xlu0 %v295, 16
        %v351 = vpop.permute.xlu0 %350
        %352 = vrot.lane.b32.xlu0 %v296, 16
        %v353 = vpop.permute.xlu0 %352
        %vm354 = vcmask 130048
        %v355 = vsel %vm354, %v351, %v353
        %v358 = vsel %vm354, 0.0, %v351
        %359 = vset.pattern.permute.xlu0 1
        %360 = vperm.xlu0 %359, %v297
        %v361 = vpop.permute.xlu0 %360
        %v363 = vmul.f32 %v361, %v358
        %v364 = vmul.f32 %v361, %v355
        %v365 = vadd.f32 %v348, %v363
        %v366 = vadd.f32 %v349, %v364
        %367 = vrot.lane.b32.xlu0 %v295, 15
        %v368 = vpop.permute.xlu0 %367
        %369 = vrot.lane.b32.xlu0 %v296, 15
        %v370 = vpop.permute.xlu0 %369
        %vm371 = vcmask 121856
        %v372 = vsel %vm371, %v368, %v370
        %v375 = vsel %vm371, 0.0, %v368
        %vm376 = vcmp.le.s32.totalorder %v324, 14
        %vm377 = vcmp.le.s32.totalorder %v325, 14
        %v378 = vsel %vm376, %v375, 0.0
        %v379 = vsel %vm377, %v372, 0.0
        %380 = vset.pattern.permute.xlu0 2
        %381 = vperm.xlu0 %380, %v297
        %v382 = vpop.permute.xlu0 %381
        %v384 = vmul.f32 %v382, %v378
        %v385 = vmul.f32 %v382, %v379
        %v386 = vadd.f32 %v365, %v384
        %v387 = vadd.f32 %v366, %v385
        %388 = vrot.lane.b32.xlu0 %v295, 1
        %v389 = vpop.permute.xlu0 %388
        %390 = vrot.lane.b32.xlu0 %v296, 1
        %v391 = vpop.permute.xlu0 %390
        %vm392 = vcmask 7168
        %v393 = vsel %vm392, %v389, %v391
        %v396 = vsel %vm392, 0.0, %v389
        %v397 = vsel %vm337, %v396, 0.0
        %v398 = vsel %vm338, %v393, 0.0
        %399 = vset.pattern.permute.xlu0 3
        %400 = vperm.xlu0 %399, %v297
        %v401 = vpop.permute.xlu0 %400
        %v403 = vmul.f32 %v401, %v397
        %v404 = vmul.f32 %v401, %v398
        %v405 = vadd.f32 %v386, %v403
        %v406 = vadd.f32 %v387, %v404
        %407 = vset.pattern.permute.xlu0 4
        %408 = vperm.xlu0 %407, %v297
        %v409 = vpop.permute.xlu0 %408
        %v411 = vmul.f32 %v409, %v295
        %v412 = vmul.f32 %v409, %v296
        %v413 = vadd.f32 %v405, %v411
        %v414 = vadd.f32 %v406, %v412
        %415 = vrot.lane.b32.xlu0 %v295, 127
        %v416 = vpop.permute.xlu0 %415
        %417 = vrot.lane.b32.xlu0 %v296, 127
        %v418 = vpop.permute.xlu0 %417
        %vm419 = vcmask 1039360
        %v420 = vsel %vm419, %v416, %v418
        %v423 = vsel %vm419, %v418, 0.0
        %v424 = vsel %vm376, %v420, 0.0
        %v425 = vsel %vm377, %v423, 0.0
        %426 = vset.pattern.permute.xlu0 5
        %427 = vperm.xlu0 %426, %v297
        %v428 = vpop.permute.xlu0 %427
        %v430 = vmul.f32 %v428, %v424
        %v431 = vmul.f32 %v428, %v425
        %v432 = vadd.f32 %v413, %v430
        %v433 = vadd.f32 %v414, %v431
        %434 = vrot.lane.b32.xlu0 %v295, 113
        %v435 = vpop.permute.xlu0 %434
        %436 = vrot.lane.b32.xlu0 %v296, 113
        %v437 = vpop.permute.xlu0 %436
        %vm438 = vcmask 924672
        %v439 = vsel %vm438, %v435, %v437
        %v442 = vsel %vm438, %v437, 0.0
        %v443 = vsel %vm337, %v439, 0.0
        %v444 = vsel %vm338, %v442, 0.0
        %445 = vset.pattern.permute.xlu0 6
        %446 = vperm.xlu0 %445, %v297
        %v447 = vpop.permute.xlu0 %446
        %v449 = vmul.f32 %v447, %v443
        %v450 = vmul.f32 %v447, %v444
        %v451 = vadd.f32 %v432, %v449
        %v452 = vadd.f32 %v433, %v450
        %453 = vrot.lane.b32.xlu0 %v295, 112
        %v454 = vpop.permute.xlu0 %453
        %455 = vrot.lane.b32.xlu0 %v296, 112
        %v456 = vpop.permute.xlu0 %455
        %vm457 = vcmask 916480
        %v458 = vsel %vm457, %v454, %v456
        %v461 = vsel %vm457, %v456, 0.0
        %462 = vset.pattern.permute.xlu0 7
        %463 = vperm.xlu0 %462, %v297
        %v464 = vpop.permute.xlu0 %463
        %v466 = vmul.f32 %v464, %v458
        %v467 = vmul.f32 %v464, %v461
        %v468 = vadd.f32 %v451, %v466
        %v469 = vadd.f32 %v452, %v467
        %470 = vrot.lane.b32.xlu0 %v295, 111
        %v471 = vpop.permute.xlu0 %470
        %472 = vrot.lane.b32.xlu0 %v296, 111
        %v473 = vpop.permute.xlu0 %472
        %vm474 = vcmask 908288
        %v475 = vsel %vm474, %v471, %v473
        %v478 = vsel %vm474, %v473, 0.0
        %v479 = vsel %vm376, %v475, 0.0
        %v480 = vsel %vm377, %v478, 0.0
        %481 = vset.pattern.permute.xlu0 8
        %482 = vperm.xlu0 %481, %v297
        %v483 = vpop.permute.xlu0 %482
        %v485 = vmul.f32 %v483, %v479
        %v486 = vmul.f32 %v483, %v480
        %v487 = vadd.f32 %v468, %v485
        %v488 = vadd.f32 %v469, %v486
        %490 = vset.pattern.permute.xlu0 0
        %491 = vperm.xlu0 %490, %v298
        %v492 = vpop.permute.xlu0 %491
        %v494 = vadd.f32 %v487, %v492
        %v495 = vadd.f32 %v488, %v492
        %vm496 = vcmp.lt.s32.totalorder %v300, 256
        %vm497 = vcmp.lt.s32.totalorder %v301, 256
        %v498 = vsel %vm496, %v494, 0.0
        %v499 = vsel %vm497, %v495, 0.0
        %500 = vst [vmem:[%s294] sm:$0xff] %v498
        %501 = vst [vmem:[%s294 + $0x8] sm:$0xff] %v499
        %s502 = sand.u32 %s140, 1
        %s503 = scalar_lea.sflag [#allocation4], %s502
        %s504 = sand.u32 %s140, 1
        %s505 = smul.addr %s504, 16
        %s506 = scalar_lea.vmem [#allocation8], %s505
        // Predicated region
        $region45: #{tpu_custom_call.1} parent=31 // pred_check
          %p507 = pneg %p150
        $region46: #{tpu_custom_call.1} parent=31 // pred_check_branch
          %509 = sbr.rel (%p507) target = $region48
        $region47: #{tpu_custom_call.1} parent=31 // pred_region
          %s511 = ssub.s32 256, 256
          %512 = vsyncadd %s503, %s511
          %s513 = smul.addr %s30, 2
          %s514 = smul.addr %s29, 2
          %s515 = sadd.s32 %s513, %s514
          %s516 = smul.addr %s28, 4
          %s517 = sadd.s32 %s515, %s516
          %s518 = smul.addr %s517, 128
          %s519 = scalar_lea.hbm %s3, %s518
          %s521 = sshll.u32 %s506, 4
          %s522 = int_to_ptr.vmem [resolvable:$true] %s521
          %524 = dma.vmem_to_hbm [thread:$0]  %s522, 256, %s519, %s503
        $region48: #{tpu_custom_call.1} parent=31 // pred_fallthru
          _
      $region32: #{tpu_custom_call.1} parent=5 // pred_fallthru
        _
      %p525 = scmp.le.s32.totalorder 2, %s18
      // Predicated region
      $region49: #{tpu_custom_call.1} parent=5 // pred_check
        %p526 = pneg %p525
      $region50: #{tpu_custom_call.1} parent=5 // pred_check_branch
        %528 = sbr.rel (%p526) target = $region52
      $region51: #{tpu_custom_call.1} parent=5 // pred_region
        %s529 = ssub.s32 %s18, 2
        // Predicated region
        $region53: #{tpu_custom_call.1} parent=51 // pred_check
          %p530 = pneg %p156
        $region54: #{tpu_custom_call.1} parent=51 // pred_check_branch
          %532 = sbr.rel (%p530) target = $region56
        $region55: #{tpu_custom_call.1} parent=51 // pred_region
          %s533 = sand.u32 %s141, 1
          %s534 = scalar_lea.sflag [#allocation4], %s533
          %s535 = sand.u32 %s141, 1
          %s536 = smul.addr %s535, 16
          %s537 = scalar_lea.vmem [#allocation8], %s536
          %538 = dma.done %s534, 256
        $region56: #{tpu_custom_call.1} parent=51 // pred_fallthru
          _
      $region52: #{tpu_custom_call.1} parent=5 // pred_fallthru
        _
    $region6: #{tpu_custom_call.1} parent=1 // loop_footer
      %s22 = sadd.s32 1, %s18
    $region7: #{tpu_custom_call.1} parent=1 // loop_footer_branch
      %17 = sbr.rel target = $region3
    $region8: #{tpu_custom_call.1} parent=1 // loop_exit
      _
    %539 = vsyncpa [#allocation3], 1
    %s540 = scalar_lea.sflag [#allocation3], 1
    %541 = vsyncpa %s540, 1
    %542 = vsyncpa [#allocation6], 1
    %s543 = scalar_lea.sflag [#allocation6], 1
    %544 = vsyncpa %s543, 1
    %545 = vsyncpa [#allocation4], 1
    %s546 = scalar_lea.sflag [#allocation4], 1
    %547 = vsyncpa %s546, 1

</llo_original>
